<compile_context>
chip_gen: v6e
topology: v6e:2x2x1
jax: 0.10.0
libtpu: 0.0.40
codegen_flags: <defaults>
</compile_context>

<pallas_src>
import jax
import jax.numpy as jnp
from jax.experimental import pallas as pl
from jax.experimental.pallas import tpu as pltpu


def _round_up(a, m):
    return (a + m - 1) // m * m


def _classifier_kernel(x_ref, w1_ref, b1_ref, w3_ref, b3_ref, o_ref):
    # fc1: [TB, E] @ [E, Hp] -> f32 accumulation on the MXU
    h = jnp.dot(x_ref[...], w1_ref[...], preferred_element_type=jnp.float32)
    h = h + b1_ref[...]                       # (1, Hp) broadcast, f32
    # sigmoid: exp (EUP) + approximate reciprocal (EUP) -> VALU slot stays free
    h = pl.reciprocal(1.0 + jnp.exp(-h), approx=True)
    # fc3: [TB, Hp] @ [Hp, Cp] -> f32 accumulation
    out = jnp.dot(h.astype(w3_ref.dtype), w3_ref[...],
                  preferred_element_type=jnp.float32)
    o_ref[...] = (out + b3_ref[...]).astype(o_ref.dtype)


def classifier_forward(x, w1, b1, w3, b3, *, block_b=512, compute_dtype=None):
    """x: [B, E]; w1: [E, H]; b1: [1, H]; w3: [H, C]; b3: [1, C] -> [B, C].

    compute_dtype: dtype used for the matmul operands (e.g. jnp.bfloat16 on
    v6e/v7x). Accumulation and the sigmoid epilogue are always float32.
    """
    B, E = x.shape
    H = w1.shape[1]
    C = w3.shape[1]
    dt = x.dtype if compute_dtype is None else compute_dtype

    # Lane-dense padding for the hidden / class dims; batch tiled in TB rows.
    H_pad = _round_up(H, 128)
    C_pad = _round_up(C, 128)
    TB = _round_up(min(block_b, B), 8)
    B_pad = _round_up(B, TB)

    xp = jnp.pad(x, ((0, B_pad - B), (0, 0))).astype(dt)
    w1p = jnp.pad(w1, ((0, 0), (0, H_pad - H))).astype(dt)
    b1p = jnp.pad(b1.reshape(1, -1), ((0, 0), (0, H_pad - H))).astype(jnp.float32)
    w3p = jnp.pad(w3, ((0, H_pad - H), (0, C_pad - C))).astype(dt)
    b3p = jnp.pad(b3.reshape(1, -1), ((0, 0), (0, C_pad - C))).astype(jnp.float32)

    def _nbytes(a):
        return a.size * a.dtype.itemsize

    cost = pl.CostEstimate(
        flops=2 * B_pad * E * H_pad + 2 * B_pad * H_pad * C_pad,
        transcendentals=B_pad * H_pad,
        bytes_accessed=(_nbytes(xp) + _nbytes(w1p) + _nbytes(b1p)
                        + _nbytes(w3p) + _nbytes(b3p)
                        + B_pad * C_pad * 4),
    )

    out = pl.pallas_call(
        _classifier_kernel,
        out_shape=jax.ShapeDtypeStruct((B_pad, C_pad), jnp.float32),
        grid=(B_pad // TB,),
        in_specs=[
            pl.BlockSpec((TB, E), lambda i: (i, 0)),        # batch tile of x
            pl.BlockSpec((E, H_pad), lambda i: (0, 0)),     # weights resident
            pl.BlockSpec((1, H_pad), lambda i: (0, 0)),     # across all tiles
            pl.BlockSpec((H_pad, C_pad), lambda i: (0, 0)),
            pl.BlockSpec((1, C_pad), lambda i: (0, 0)),
        ],
        out_specs=pl.BlockSpec((TB, C_pad), lambda i: (i, 0)),  # lane-dense store
        compiler_params=pltpu.CompilerParams(
            dimension_semantics=("parallel",)),
        cost_estimate=cost,
    )(xp, w1p, b1p, w3p, b3p)

    return out[:B, :C].astype(x.dtype)


def init_params(key, embedding_size, hidden_size, cls_num):
    """Deterministic synthetic parameters matching nn.Linear shapes
    (stored transposed: [in, out])."""
    k1, k2, k3, k4 = jax.random.split(key, 4)
    s1 = 1.0 / jnp.sqrt(embedding_size)
    s3 = 1.0 / jnp.sqrt(hidden_size)
    w1 = jax.random.uniform(k1, (embedding_size, hidden_size),
                            jnp.float32, -s1, s1)
    b1 = jax.random.uniform(k2, (1, hidden_size), jnp.float32, -s1, s1)
    w3 = jax.random.uniform(k3, (hidden_size, cls_num),
                            jnp.float32, -s3, s3)
    b3 = jax.random.uniform(k4, (1, cls_num), jnp.float32, -s3, s3)
    return w1, b1, w3, b3


def reference_forward(x, w1, b1, w3, b3):
    h = jax.nn.sigmoid(x @ w1 + b1)
    return h @ w3 + b3


if __name__ == "__main__":
    batch = 8
    embedding_size = 32
    hidden_size = 64
    cls_num = 12

    key = jax.random.PRNGKey(0)
    kx, kp = jax.random.split(key)
    x = jax.random.normal(kx, (batch, embedding_size), jnp.float32)
    w1, b1, w3, b3 = init_params(kp, embedding_size, hidden_size, cls_num)

    ref = reference_forward(x, w1, b1, w3, b3)

    # f32 matmul path (tolerance covers the EUP approximate-reciprocal sigmoid).
    out_f32 = jax.block_until_ready(classifier_forward(x, w1, b1, w3, b3))
    assert out_f32.shape == (batch, cls_num)
    assert jnp.allclose(out_f32, ref, atol=1e-2, rtol=1e-2), "f32 mismatch vs reference"

    # bf16 matmul-operand path (v6e/v7x MXU fast path), f32 accumulation.
    out_bf16 = jax.block_until_ready(
        classifier_forward(x, w1, b1, w3, b3, compute_dtype=jnp.bfloat16))
    assert out_bf16.shape == (batch, cls_num)
    assert jnp.allclose(out_bf16, ref, atol=5e-2, rtol=5e-2), "bf16 mismatch vs reference"

    print("KERNEL_OK")
</pallas_src>

<mosaic_0001>
module attributes {stable_mosaic.version = 11 : i64} {
  func.func @_classifier_kernel(%arg0: i32, %arg1: memref<8x32xf32, #tpu.memory_space<vmem>>, %arg2: memref<32x128xf32, #tpu.memory_space<vmem>>, %arg3: memref<1x128xf32, #tpu.memory_space<vmem>>, %arg4: memref<128x128xf32, #tpu.memory_space<vmem>>, %arg5: memref<1x128xf32, #tpu.memory_space<vmem>>, %arg6: memref<8x128xf32, #tpu.memory_space<vmem>>) attributes {dimension_semantics = [#tpu.dimension_semantics<parallel>], iteration_bounds = array<i64: 1>, scalar_prefetch = 0 : i64, scratch_operands = 0 : i64, tpu.core_type = #tpu.core_type<tc>, window_params = [{transform_indices = @transform_0, window_bounds = array<i64: 8, 32>}, {pipeline_mode = #tpu.pipeline_mode<synchronous>, transform_indices = @transform_1, window_bounds = array<i64: 32, 128>}, {pipeline_mode = #tpu.pipeline_mode<synchronous>, transform_indices = @transform_2, window_bounds = array<i64: 1, 128>}, {pipeline_mode = #tpu.pipeline_mode<synchronous>, transform_indices = @transform_3, window_bounds = array<i64: 128, 128>}, {pipeline_mode = #tpu.pipeline_mode<synchronous>, transform_indices = @transform_4, window_bounds = array<i64: 1, 128>}, {transform_indices = @transform_5, window_bounds = array<i64: 8, 128>}]} {
    %c0 = arith.constant 0 : index
    %c0_0 = arith.constant 0 : index
    %0 = vector.load %arg1[%c0, %c0_0] : memref<8x32xf32, #tpu.memory_space<vmem>>, vector<8x32xf32>
    %c0_1 = arith.constant 0 : index
    %c0_2 = arith.constant 0 : index
    %1 = vector.load %arg2[%c0_1, %c0_2] : memref<32x128xf32, #tpu.memory_space<vmem>>, vector<32x128xf32>
    %cst = arith.constant dense<0.000000e+00> : vector<8x128xf32>
    %2 = tpu.matmul %0, %1, %cst {dimension_numbers = #tpu.dot_dimension_numbers<[1], [0], [0], [1], [0, 0, 1, 1], [], []>} : vector<8x32xf32>, vector<32x128xf32>, vector<8x128xf32> -> vector<8x128xf32>
    %c0_3 = arith.constant 0 : index
    %c0_4 = arith.constant 0 : index
    %3 = vector.load %arg3[%c0_3, %c0_4] : memref<1x128xf32, #tpu.memory_space<vmem>>, vector<1x128xf32>
    %4 = vector.broadcast %3 : vector<1x128xf32> to vector<8x128xf32>
    %5 = arith.addf %2, %4 : vector<8x128xf32>
    %cst_5 = arith.constant 0.000000e+00 : f32
    %6 = vector.broadcast %cst_5 : f32 to vector<8x128xf32>
    %7 = arith.subf %6, %5 : vector<8x128xf32>
    %8 = math.exp %7 : vector<8x128xf32>
    %cst_6 = arith.constant 1.000000e+00 : f32
    %9 = vector.broadcast %cst_6 : f32 to vector<8x128xf32>
    %10 = arith.addf %9, %8 : vector<8x128xf32>
    %11 = tpu.reciprocal %10 {approx = true} : vector<8x128xf32> -> vector<8x128xf32>
    %c0_7 = arith.constant 0 : index
    %c0_8 = arith.constant 0 : index
    %12 = vector.load %arg4[%c0_7, %c0_8] : memref<128x128xf32, #tpu.memory_space<vmem>>, vector<128x128xf32>
    %cst_9 = arith.constant dense<0.000000e+00> : vector<8x128xf32>
    %13 = tpu.matmul %11, %12, %cst_9 {dimension_numbers = #tpu.dot_dimension_numbers<[1], [0], [0], [1], [0, 0, 1, 1], [], []>} : vector<8x128xf32>, vector<128x128xf32>, vector<8x128xf32> -> vector<8x128xf32>
    %c0_10 = arith.constant 0 : index
    %c0_11 = arith.constant 0 : index
    %14 = vector.load %arg5[%c0_10, %c0_11] : memref<1x128xf32, #tpu.memory_space<vmem>>, vector<1x128xf32>
    %15 = vector.broadcast %14 : vector<1x128xf32> to vector<8x128xf32>
    %16 = arith.addf %13, %15 : vector<8x128xf32>
    %c0_12 = arith.constant 0 : index
    %c0_13 = arith.constant 0 : index
    %17 = vector.load %arg6[%c0_12, %c0_13] : memref<8x128xf32, #tpu.memory_space<vmem>>, vector<8x128xf32>
    tpu.vector_store %arg6[%c0_12, %c0_13], %16 {strides = array<i32>} : memref<8x128xf32, #tpu.memory_space<vmem>>, vector<8x128xf32>,
    return
  }
  func.func @transform_0(%arg0: i32) -> (i32, i32) {
    %c0_i32 = arith.constant 0 : i32
    %c0_i32_0 = arith.constant 0 : i32
    return %arg0, %c0_i32 : i32, i32
  }
  func.func @transform_1(%arg0: i32) -> (i32, i32) {
    %c0_i32 = arith.constant 0 : i32
    %c0_i32_0 = arith.constant 0 : i32
    %c0_i32_1 = arith.constant 0 : i32
    return %c0_i32, %c0_i32_0 : i32, i32
  }
  func.func @transform_2(%arg0: i32) -> (i32, i32) {
    %c0_i32 = arith.constant 0 : i32
    %c0_i32_0 = arith.constant 0 : i32
    %c0_i32_1 = arith.constant 0 : i32
    return %c0_i32, %c0_i32_0 : i32, i32
  }
  func.func @transform_3(%arg0: i32) -> (i32, i32) {
    %c0_i32 = arith.constant 0 : i32
    %c0_i32_0 = arith.constant 0 : i32
    %c0_i32_1 = arith.constant 0 : i32
    return %c0_i32, %c0_i32_0 : i32, i32
  }
  func.func @transform_4(%arg0: i32) -> (i32, i32) {
    %c0_i32 = arith.constant 0 : i32
    %c0_i32_0 = arith.constant 0 : i32
    %c0_i32_1 = arith.constant 0 : i32
    return %c0_i32, %c0_i32_0 : i32, i32
  }
  func.func @transform_5(%arg0: i32) -> (i32, i32) {
    %c0_i32 = arith.constant 0 : i32
    %c0_i32_0 = arith.constant 0 : i32
    return %arg0, %c0_i32 : i32, i32
  }
}

</mosaic_0001>

<llo_original>
// kernel: tpu_custom_call.1
$region0: #{tpu_custom_call.1}
  #allocation0 [shape = 'u32[]', space=smem, size = 0x4, offset = 0x4, fixed_abs, tag = 'smem constant byte address 0x4 - core index']
  #allocation1 [shape = 'u32[144,128]{1,0:T(1,128)}', space=vmem, size = 0x12000, scoped, tag = 'internal scratch']
  %s0 = inlined_call_operand.hbm [shape: f32[8,32], index: 0, kind: input, shape index: {}]
  %s1 = inlined_call_operand.hbm [shape: f32[32,128], index: 1, kind: input, shape index: {}]
  %s2 = inlined_call_operand.vmem [shape: f32[1,128], index: 2, kind: input, shape index: {}]
  %s3 = inlined_call_operand.hbm [shape: f32[128,128], index: 3, kind: input, shape index: {}]
  %s4 = inlined_call_operand.vmem [shape: f32[1,128], index: 4, kind: input, shape index: {}]
  %s5 = inlined_call_operand.hbm [shape: f32[8,128], index: 5, kind: output, shape index: {}]
  %s6 = sld [smem:[#allocation0]]
  $region42: #{tpu_custom_call.1} parent=0
    _
  %s8 = ssub.s32 1, %s6
  %s9 = scalar_select 0, %s8, %s6
  $region1: #{tpu_custom_call.1} parent=0
    #allocation2 [shape = 'u8[4096]{0}', space=vmem, size = 0x1000, scoped, tag = 'input window, operand 0, single buffered']
    #allocation3 [shape = 's32[1]{0}', space=sflag, size = 0x4, scoped, tag = 'scoped memory for tpu_custom_call.1']
    #allocation4 [shape = 's32[1]{0}', space=sflag, size = 0x4, scoped, tag = 'scoped memory for tpu_custom_call.1']
    #allocation5 [shape = 'u8[16384]{0}', space=vmem, size = 0x4000, scoped, tag = 'input window, operand 1, single buffered']
    #allocation6 [shape = 's32[1]{0}', space=sflag, size = 0x4, scoped, tag = 'scoped memory for tpu_custom_call.1']
    #allocation7 [shape = 'u8[65536]{0}', space=vmem, size = 0x10000, scoped, tag = 'input window, operand 3, single buffered']
    #allocation8 [shape = 'u8[4096]{0}', space=vmem, size = 0x1000, scoped, tag = 'output window, operand 0, single buffered']
    %10 = vsyncpa [#allocation3], 0
    %11 = vsyncpa [#allocation6], 0
    %12 = vsyncpa [#allocation4], 0
    // Predicated region
    $region2: #{tpu_custom_call.1} parent=1 // pred_check
      _
    $region3: #{tpu_custom_call.1} parent=1 // pred_check_branch
      %14 = sbr.rel (0) target = $region5
    $region4: #{tpu_custom_call.1} parent=1 // pred_region
      %s16 = ssub.s32 128, 128
      %17 = vsyncadd [#allocation3], %s16
      %s19 = sshll.u32 [#allocation2], 4
      %s20 = int_to_ptr.vmem [resolvable:$true] %s19
      %22 = dma.hbm_to_vmem [thread:$0]  %s0, 128, %s20, [#allocation3]
    $region5: #{tpu_custom_call.1} parent=1 // pred_fallthru
      _
    // Predicated region
    $region6: #{tpu_custom_call.1} parent=1 // pred_check
      _
    $region7: #{tpu_custom_call.1} parent=1 // pred_check_branch
      %24 = sbr.rel (0) target = $region9
    $region8: #{tpu_custom_call.1} parent=1 // pred_region
      %s26 = ssub.s32 512, 512
      %27 = vsyncadd [#allocation6], %s26
      %s28 = sshll.u32 [#allocation5], 4
      %s29 = int_to_ptr.vmem [resolvable:$true] %s28
      %34 = dma.hbm_to_vmem [thread:$0]  %s1, 512, %s29, [#allocation6], 128, 128, 8
    $region9: #{tpu_custom_call.1} parent=1 // pred_fallthru
      _
    // Predicated region
    $region10: #{tpu_custom_call.1} parent=1 // pred_check
      _
    $region11: #{tpu_custom_call.1} parent=1 // pred_check_branch
      %36 = sbr.rel (0) target = $region13
    $region12: #{tpu_custom_call.1} parent=1 // pred_region
      _
    $region13: #{tpu_custom_call.1} parent=1 // pred_fallthru
      _
    // Predicated region
    $region14: #{tpu_custom_call.1} parent=1 // pred_check
      _
    $region15: #{tpu_custom_call.1} parent=1 // pred_check_branch
      %38 = sbr.rel (0) target = $region17
    $region16: #{tpu_custom_call.1} parent=1 // pred_region
      %s40 = ssub.s32 2048, 2048
      %41 = vsyncadd [#allocation6], %s40
      %s42 = sshll.u32 [#allocation7], 4
      %s43 = int_to_ptr.vmem [resolvable:$true] %s42
      %48 = dma.hbm_to_vmem [thread:$0]  %s3, 2048, %s43, [#allocation6], 128, 128, 8
    $region17: #{tpu_custom_call.1} parent=1 // pred_fallthru
      _
    // Predicated region
    $region18: #{tpu_custom_call.1} parent=1 // pred_check
      _
    $region19: #{tpu_custom_call.1} parent=1 // pred_check_branch
      %50 = sbr.rel (0) target = $region21
    $region20: #{tpu_custom_call.1} parent=1 // pred_region
      _
    $region21: #{tpu_custom_call.1} parent=1 // pred_fallthru
      _
    // Predicated region
    $region22: #{tpu_custom_call.1} parent=1 // pred_check
      _
    $region23: #{tpu_custom_call.1} parent=1 // pred_check_branch
      %52 = sbr.rel (0) target = $region25
    $region24: #{tpu_custom_call.1} parent=1 // pred_region
      %53 = dma.done [#allocation3], 128
    $region25: #{tpu_custom_call.1} parent=1 // pred_fallthru
      _
    // Predicated region
    $region26: #{tpu_custom_call.1} parent=1 // pred_check
      _
    $region27: #{tpu_custom_call.1} parent=1 // pred_check_branch
      %55 = sbr.rel (0) target = $region29
    $region28: #{tpu_custom_call.1} parent=1 // pred_region
      %56 = dma.done [#allocation6], 512
    $region29: #{tpu_custom_call.1} parent=1 // pred_fallthru
      _
    // Predicated region
    $region30: #{tpu_custom_call.1} parent=1 // pred_check
      _
    $region31: #{tpu_custom_call.1} parent=1 // pred_check_branch
      %58 = sbr.rel (0) target = $region33
    $region32: #{tpu_custom_call.1} parent=1 // pred_region
      %59 = dma.done [#allocation6], 2048
    $region33: #{tpu_custom_call.1} parent=1 // pred_fallthru
      _
    %v60 = vld [vmem:[#allocation2] sm:$0xff]
    %v61 = vld [vmem:[#allocation5] sm:$0xff]
    %v62 = vld [vmem:[#allocation5 + $0x8] sm:$0xff]
    %v63 = vld [vmem:[#allocation5 + $0x10] sm:$0xff]
    %v64 = vld [vmem:[#allocation5 + $0x18] sm:$0xff]
    %v65 = vld [vmem:[%s2] sm:$0x1]
    %v67 = vlaneseq
    %v68 = vshrl.u32 %v67, 7
    %v69 = vsub.s32 0, %v68
    %v70 = vrot.slane %v65, %v69
    %vm72 = vcmask 261120
    %v74 = vsel %vm72, %v60, 0
    %76 = vmatprep.subr.mxu0 0.0
    %77 = vmatpush1.msra.mxu0 0.0
    %78 = vmatprep.subr.mxu0 0.0
    %79 = vmatpush1.msra.mxu0 0.0
    %80 = vmatprep.subr.mxu0 0.0
    %81 = vmatpush1.msra.mxu0 0.0
    %82 = vmatprep.subr.mxu0 0.0
    %83 = vmatpush1.msra.mxu0 0.0
    %84 = vmatprep.subr.mxu0 0.0
    %85 = vmatpush1.msra.mxu0 0.0
    %86 = vmatprep.subr.mxu0 0.0
    %87 = vmatpush1.msra.mxu0 0.0
    %88 = vmatprep.subr.mxu0 0.0
    %89 = vmatpush1.msra.mxu0 0.0
    %90 = vmatprep.subr.mxu0 0.0
    %91 = vmatpush1.msra.mxu0 0.0
    %92 = vmatprep.subr.mxu0 0.0
    %93 = vmatpush1.msra.mxu0 0.0
    %94 = vmatprep.subr.mxu0 0.0
    %95 = vmatpush1.msra.mxu0 0.0
    %96 = vmatprep.subr.mxu0 0.0
    %97 = vmatpush1.msra.mxu0 0.0
    %98 = vmatprep.subr.mxu0 0.0
    %99 = vmatpush1.msra.mxu0 0.0
    %100 = vmatprep.subr.mxu0 0.0
    %101 = vmatpush1.msra.mxu0 %v64
    %102 = vmatprep.subr.mxu0 0.0
    %103 = vmatpush1.msra.mxu0 %v63
    %104 = vmatprep.subr.mxu0 0.0
    %105 = vmatpush1.msra.mxu0 %v62
    %106 = vmatprep.subr.mxu0 0.0
    %107 = vmatpush1.msra.mxu0 %v61
    %108 = vmatprep.subr.mxu0 0.0
    %109 = vmatpush2.msra.mxu0 0.0
    %110 = vmatprep.subr.mxu0 0.0
    %111 = vmatpush2.msra.mxu0 0.0
    %112 = vmatprep.subr.mxu0 0.0
    %113 = vmatpush2.msra.mxu0 0.0
    %114 = vmatprep.subr.mxu0 0.0
    %115 = vmatpush2.msra.mxu0 0.0
    %116 = vmatprep.subr.mxu0 0.0
    %117 = vmatpush2.msra.mxu0 0.0
    %118 = vmatprep.subr.mxu0 0.0
    %119 = vmatpush2.msra.mxu0 0.0
    %120 = vmatprep.subr.mxu0 0.0
    %121 = vmatpush2.msra.mxu0 0.0
    %122 = vmatprep.subr.mxu0 0.0
    %123 = vmatpush2.msra.mxu0 0.0
    %124 = vmatprep.subr.mxu0 0.0
    %125 = vmatpush2.msra.mxu0 0.0
    %126 = vmatprep.subr.mxu0 0.0
    %127 = vmatpush2.msra.mxu0 0.0
    %128 = vmatprep.subr.mxu0 0.0
    %129 = vmatpush2.msra.mxu0 0.0
    %130 = vmatprep.subr.mxu0 0.0
    %131 = vmatpush2.msra.mxu0 0.0
    %132 = vmatprep.subr.mxu0 0.0
    %133 = vmatpush2.msra.mxu0 0.0
    %134 = vmatprep.subr.mxu0 0.0
    %135 = vmatpush2.msra.mxu0 0.0
    %136 = vmatprep.subr.mxu0 0.0
    %137 = vmatpush2.msra.mxu0 0.0
    %138 = vmatprep.subr.mxu0 0.0
    %139 = vmatpush2.msra.mxu0 0.0
    %140 = vmatprep.mubr.f32.mxu0 0.0
    %141 = vmatmul.mubr.f32.gmra.mxu0 %v74
    %v142 = vpop.f32.mrf.mxu0
    %v143 = vadd.f32 %v70, %v142
    %v144 = vpop.f32.mrf.mxu0
    %145 = vdwg.mxu0
    %v146 = vsub.f32 0.0, %v143
    %v147 = vmul.f32 %v146, 1.442695
    %v148 = vpow.pop %v147
    %v149 = vadd.f32 %v148, 1.0
    %v150 = vrcp.pop %v149
    %v151 = vld [vmem:[#allocation7] sm:$0xff]
    %v152 = vld [vmem:[#allocation7 + $0x8] sm:$0xff]
    %v153 = vld [vmem:[#allocation7 + $0x10] sm:$0xff]
    %v154 = vld [vmem:[#allocation7 + $0x18] sm:$0xff]
    %v155 = vld [vmem:[#allocation7 + $0x20] sm:$0xff]
    %v156 = vld [vmem:[#allocation7 + $0x28] sm:$0xff]
    %v157 = vld [vmem:[#allocation7 + $0x30] sm:$0xff]
    %v158 = vld [vmem:[#allocation7 + $0x38] sm:$0xff]
    %v159 = vld [vmem:[#allocation7 + $0x40] sm:$0xff]
    %v160 = vld [vmem:[#allocation7 + $0x48] sm:$0xff]
    %v161 = vld [vmem:[#allocation7 + $0x50] sm:$0xff]
    %v162 = vld [vmem:[#allocation7 + $0x58] sm:$0xff]
    %v163 = vld [vmem:[#allocation7 + $0x60] sm:$0xff]
    %v164 = vld [vmem:[#allocation7 + $0x68] sm:$0xff]
    %v165 = vld [vmem:[#allocation7 + $0x70] sm:$0xff]
    %v166 = vld [vmem:[#allocation7 + $0x78] sm:$0xff]
    %v167 = vld [vmem:[%s4] sm:$0x1]
    %v169 = vlaneseq
    %v170 = vshrl.u32 %v169, 7
    %v171 = vsub.s32 0, %v170
    %v172 = vrot.slane %v167, %v171
    %174 = vmatprep.subr.mxu0 0.0
    %175 = vmatpush1.msra.mxu0 %v166
    %176 = vmatprep.subr.mxu0 0.0
    %177 = vmatpush1.msra.mxu0 %v165
    %178 = vmatprep.subr.mxu0 0.0
    %179 = vmatpush1.msra.mxu0 %v164
    %180 = vmatprep.subr.mxu0 0.0
    %181 = vmatpush1.msra.mxu0 %v163
    %182 = vmatprep.subr.mxu0 0.0
    %183 = vmatpush1.msra.mxu0 %v162
    %184 = vmatprep.subr.mxu0 0.0
    %185 = vmatpush1.msra.mxu0 %v161
    %186 = vmatprep.subr.mxu0 0.0
    %187 = vmatpush1.msra.mxu0 %v160
    %188 = vmatprep.subr.mxu0 0.0
    %189 = vmatpush1.msra.mxu0 %v159
    %190 = vmatprep.subr.mxu0 0.0
    %191 = vmatpush1.msra.mxu0 %v158
    %192 = vmatprep.subr.mxu0 0.0
    %193 = vmatpush1.msra.mxu0 %v157
    %194 = vmatprep.subr.mxu0 0.0
    %195 = vmatpush1.msra.mxu0 %v156
    %196 = vmatprep.subr.mxu0 0.0
    %197 = vmatpush1.msra.mxu0 %v155
    %198 = vmatprep.subr.mxu0 0.0
    %199 = vmatpush1.msra.mxu0 %v154
    %200 = vmatprep.subr.mxu0 0.0
    %201 = vmatpush1.msra.mxu0 %v153
    %202 = vmatprep.subr.mxu0 0.0
    %203 = vmatpush1.msra.mxu0 %v152
    %204 = vmatprep.subr.mxu0 0.0
    %205 = vmatpush1.msra.mxu0 %v151
    %206 = vmatprep.subr.mxu0 0.0
    %207 = vmatpush2.msra.mxu0 0.0
    %208 = vmatprep.subr.mxu0 0.0
    %209 = vmatpush2.msra.mxu0 0.0
    %210 = vmatprep.subr.mxu0 0.0
    %211 = vmatpush2.msra.mxu0 0.0
    %212 = vmatprep.subr.mxu0 0.0
    %213 = vmatpush2.msra.mxu0 0.0
    %214 = vmatprep.subr.mxu0 0.0
    %215 = vmatpush2.msra.mxu0 0.0
    %216 = vmatprep.subr.mxu0 0.0
    %217 = vmatpush2.msra.mxu0 0.0
    %218 = vmatprep.subr.mxu0 0.0
    %219 = vmatpush2.msra.mxu0 0.0
    %220 = vmatprep.subr.mxu0 0.0
    %221 = vmatpush2.msra.mxu0 0.0
    %222 = vmatprep.subr.mxu0 0.0
    %223 = vmatpush2.msra.mxu0 0.0
    %224 = vmatprep.subr.mxu0 0.0
    %225 = vmatpush2.msra.mxu0 0.0
    %226 = vmatprep.subr.mxu0 0.0
    %227 = vmatpush2.msra.mxu0 0.0
    %228 = vmatprep.subr.mxu0 0.0
    %229 = vmatpush2.msra.mxu0 0.0
    %230 = vmatprep.subr.mxu0 0.0
    %231 = vmatpush2.msra.mxu0 0.0
    %232 = vmatprep.subr.mxu0 0.0
    %233 = vmatpush2.msra.mxu0 0.0
    %234 = vmatprep.subr.mxu0 0.0
    %235 = vmatpush2.msra.mxu0 0.0
    %236 = vmatprep.subr.mxu0 0.0
    %237 = vmatpush2.msra.mxu0 0.0
    %238 = vmatprep.mubr.f32.mxu0 0.0
    %239 = vmatmul.mubr.f32.gmra.mxu0 %v150
    %v240 = vpop.f32.mrf.mxu0
    %v241 = vadd.f32 %v172, %v240
    %v242 = vpop.f32.mrf.mxu0
    %243 = vdwg.mxu0
    %244 = vst [vmem:[#allocation8] sm:$0xff] %v241
    // Predicated region
    $region34: #{tpu_custom_call.1} parent=1 // pred_check
      _
    $region35: #{tpu_custom_call.1} parent=1 // pred_check_branch
      %246 = sbr.rel (0) target = $region37
    $region36: #{tpu_custom_call.1} parent=1 // pred_region
      %s248 = ssub.s32 128, 128
      %249 = vsyncadd [#allocation4], %s248
      %s251 = sshll.u32 [#allocation8], 4
      %s252 = int_to_ptr.vmem [resolvable:$true] %s251
      %254 = dma.vmem_to_hbm [thread:$0]  %s252, 128, %s5, [#allocation4]
    $region37: #{tpu_custom_call.1} parent=1 // pred_fallthru
      _
    // Predicated region
    $region38: #{tpu_custom_call.1} parent=1 // pred_check
      _
    $region39: #{tpu_custom_call.1} parent=1 // pred_check_branch
      %256 = sbr.rel (0) target = $region41
    $region40: #{tpu_custom_call.1} parent=1 // pred_region
      %257 = dma.done [#allocation4], 128
    $region41: #{tpu_custom_call.1} parent=1 // pred_fallthru
      _
    %258 = vsyncpa [#allocation3], 1
    %259 = vsyncpa [#allocation6], 1
    %260 = vsyncpa [#allocation4], 1

</llo_original>
